<compile_context>
chip_gen: v7x
topology: tpu7x:2x2x1
jax: 0.10.0
libtpu: 0.0.40
codegen_flags: <defaults>
</compile_context>

<pallas_src>
import functools
import math

import jax
import jax.numpy as jnp
from jax import lax
from jax.experimental import pallas as pl
from jax.experimental.pallas import tpu as pltpu


# Per-batch (M,K)+(K,N)+(M,N) byte footprint below which we take the
# "whole-matrix per step" path.
_SMALL_BLOCK_BYTES = 3 * 1024 * 1024
# Shared-x small path: bound the number of unrolled per-batch dots.
_MAX_UNROLLED_BT = 16


def _round_up(a, b):
    return ((a + b - 1) // b) * b


def _largest_divisor_leq(n, cap):
    cap = max(1, min(cap, n))
    for d in range(cap, 0, -1):
        if n % d == 0:
            return d
    return 1


def _sublane_pack(dtype):
    # Rows packed per vreg sublane group: f32 -> 8, bf16 -> 16, int8/fp8 -> 32.
    return max(8, 32 // jnp.dtype(dtype).itemsize)


@functools.lru_cache(maxsize=None)
def _tpu_config():
    """Returns (vmem_limit_bytes, small_path_vmem_budget, num_tensorcores)."""
    vmem_cap = 64 * 1024 * 1024          # conservative default (v7x-sized VMEM)
    try:
        info = pltpu.get_tpu_info()
        cap = getattr(info, "vmem_capacity_bytes", None)
        if cap:
            vmem_cap = int(cap)
    except Exception:
        pass
    ntc = 1
    try:
        kind = jax.devices()[0].device_kind.lower()
        # Chips with 2 TensorCores per chip (megacore / dual-TC).
        if any(tag in kind for tag in ("v4", "v5p", "v7")):
            ntc = 2
    except Exception:
        pass
    # Leave headroom for compiler-internal scratch: ~3/4 of physical VMEM,
    # i.e. ~96 MiB on v5e/v6e (128 MiB) and ~48 MiB on v7x (64 MiB).
    vmem_limit = max(32 * 1024 * 1024, min(vmem_cap * 3 // 4, 96 * 1024 * 1024))
    small_budget = vmem_limit // 2
    return vmem_limit, small_budget, ntc


# ---------------------------------------------------------------------------
# Small path kernels: grid=(B // bT,), one bT-block of matmuls per step.
# ---------------------------------------------------------------------------
def _small_bmm_both_kernel(x_ref, y_ref, o_ref, *, acc_dtype):
    o_ref[...] = jnp.einsum(
        "bmk,bkn->bmn", x_ref[...], y_ref[...],
        preferred_element_type=acc_dtype).astype(o_ref.dtype)


def _small_bmm_shared_y_kernel(x_ref, y_ref, o_ref, *, acc_dtype, collapse):
    xv = x_ref[...]                      # (bT, M, K)
    yv = y_ref[...]                      # (K, N)  -- single shared RHS
    if collapse:
        # One tall MXU matmul instead of bT tiny ones.  M is a multiple of the
        # sublane pack, so the (bT, M, K) -> (bT*M, K) reshape is a layout no-op.
        bT, M, K = xv.shape
        out = jnp.dot(xv.reshape(bT * M, K), yv,
                      preferred_element_type=acc_dtype)
        o_ref[...] = out.reshape(bT, M, out.shape[-1]).astype(o_ref.dtype)
    else:
        o_ref[...] = jnp.einsum(
            "bmk,kn->bmn", xv, yv,
            preferred_element_type=acc_dtype).astype(o_ref.dtype)


def _small_bmm_shared_x_kernel(x_ref, y_ref, o_ref, *, acc_dtype, bT):
    # x is shared across the batch: keep the single (M, K) tile and unroll bT
    # 2-D dots -- no materialized (bT, M, K) broadcast in VMEM (lower vreg
    # pressure, bT-sizing budget stays accurate).
    xv = x_ref[...]                      # (M, K)

    def body(b, carry):
        o_ref[b] = jnp.dot(xv, y_ref[b],
                           preferred_element_type=acc_dtype).astype(o_ref.dtype)
        return carry

    lax.fori_loop(0, bT, body, 0, unroll=True)


def _small_matmul(xb, yb, x_batched, y_batched, B, M, K, N, out_dtype, acc_dtype):
    vmem_limit, small_budget, ntc = _tpu_config()
    x_item = xb.dtype.itemsize
    y_item = yb.dtype.itemsize
    o_item = jnp.dtype(out_dtype).itemsize

    per_b = M * N * o_item
    shared = 0
    if x_batched:
        per_b += M * K * x_item
    else:
        shared += M * K * x_item
    if y_batched:
        per_b += K * N * y_item
    else:
        shared += K * N * y_item

    avail = max(1 << 20, small_budget - 2 * shared)
    cap = max(1, avail // max(1, 2 * per_b))      # 2x: double-buffering
    if ntc >= 2 and B >= ntc:
        # Keep >= ntc grid steps so both TensorCores get work (dual-TC chips
        # only; on single-TC v5e/v6e extra steps are pure per-step overhead).
        cap = min(cap, max(1, B // ntc))
    if not x_batched:
        cap = min(cap, _MAX_UNROLLED_BT)          # bound the unrolled dot count
    bT = _largest_divisor_leq(B, cap)
    grid = (B // bT,)

    in_specs = []
    if x_batched:
        in_specs.append(pl.BlockSpec((bT, M, K), lambda b: (b, 0, 0)))
    else:
        # Shared across the batch: ONE physical HBM copy, re-used every step.
        in_specs.append(pl.BlockSpec((pl.Squeezed(), M, K), lambda b: (0, 0, 0)))
    if y_batched:
        in_specs.append(pl.BlockSpec((bT, K, N), lambda b: (b, 0, 0)))
    else:
        in_specs.append(pl.BlockSpec((pl.Squeezed(), K, N), lambda b: (0, 0, 0)))

    if x_batched and y_batched:
        kernel = functools.partial(_small_bmm_both_kernel, acc_dtype=acc_dtype)
    elif x_batched:  # y shared
        collapse = (M % _sublane_pack(xb.dtype) == 0)
        kernel = functools.partial(_small_bmm_shared_y_kernel,
                                   acc_dtype=acc_dtype, collapse=collapse)
    else:            # x shared
        kernel = functools.partial(_small_bmm_shared_x_kernel,
                                   acc_dtype=acc_dtype, bT=bT)

    # TODO(synk): for N < 128 output stores are lane-masked (vst.msk); padding
    # N to 128 gives unmasked stores but the wrapper-side slice-back adds a
    # full extra read+write of the output, so it is left off here.

    cost = pl.CostEstimate(
        flops=2 * B * M * K * N,
        transcendentals=0,
        bytes_accessed=int(xb.size) * x_item + int(yb.size) * y_item
        + B * M * N * o_item)

    return pl.pallas_call(
        kernel,
        out_shape=jax.ShapeDtypeStruct((B, M, N), out_dtype),
        grid_spec=pltpu.PrefetchScalarGridSpec(
            num_scalar_prefetch=0,
            grid=grid,
            in_specs=in_specs,
            out_specs=pl.BlockSpec((bT, M, N), lambda b: (b, 0, 0)),
        ),
        compiler_params=pltpu.CompilerParams(
            dimension_semantics=("parallel",),
            vmem_limit_bytes=vmem_limit),
        cost_estimate=cost,
    )(xb, yb)


# ---------------------------------------------------------------------------
# Tiled path: grid=(B, M/tm, N/tn, K/tk) with an f32 accumulator in VMEM.
# ---------------------------------------------------------------------------
def _tiled_mm_kernel(x_ref, y_ref, o_ref, acc_ref):
    @pl.when(pl.program_id(3) == 0)
    def _():
        acc_ref[...] = jnp.zeros_like(acc_ref)

    acc_ref[...] += jnp.dot(x_ref[...], y_ref[...],
                            preferred_element_type=acc_ref.dtype)

    # Cast + store only once per output tile (last K step).  HBM writeback of
    # the output block already happens only when the block index changes, so
    # the per-K-step cast/store was pure wasted VPU + vst work.
    @pl.when(pl.program_id(3) == pl.num_programs(3) - 1)
    def _():
        o_ref[...] = acc_ref[...].astype(o_ref.dtype)


def _tiled_matmul(xb, yb, x_batched, y_batched, B, M, K, N, out_dtype, acc_dtype):
    vmem_limit, _, _ = _tpu_config()
    x_item = xb.dtype.itemsize
    y_item = yb.dtype.itemsize
    o_item = jnp.dtype(out_dtype).itemsize
    pack_m = _sublane_pack(xb.dtype)

    # K tile from a candidate set minimizing zero-padding of K.  Only K must be
    # physically zero-padded (garbage in the K range would corrupt valid output
    # elements); M/N edges rely on Pallas block masking, so no full-operand
    # jnp.pad copies of x/y in HBM and no output slice-back.
    tk, Kp, best = 128, _round_up(K, 128), None
    for cand in (1024, 512, 256, 128):
        kp = _round_up(K, cand)
        key = (kp - K, -cand)
        if best is None or key < best:
            best, tk, Kp = key, cand, kp

    # Large output tiles: 512x512xf32 with tk<=1024 double-buffers at ~7-11 MiB,
    # well inside every generation's budget, and halves operand re-reads vs 256.
    tm = 512 if M > 512 else _round_up(M, pack_m)
    tn = 512 if N > 512 else _round_up(N, 128)

    def footprint(tm_, tn_, tk_):
        return (2 * (tm_ * tk_ * x_item + tk_ * tn_ * y_item + tm_ * tn_ * o_item)
                + tm_ * tn_ * 4)

    budget = vmem_limit * 3 // 4
    while footprint(tm, tn, tk) > budget and tk > 128:
        tk = max(128, tk // 2)
        Kp = _round_up(K, tk)
    while footprint(tm, tn, tk) > budget and tn > 128:
        tn = max(128, _round_up(tn // 2, 128))
    while footprint(tm, tn, tk) > budget and tm > pack_m:
        tm = max(pack_m, _round_up(tm // 2, pack_m))

    if Kp != K:
        xb = jnp.pad(xb, ((0, 0), (0, 0), (0, Kp - K)))
        yb = jnp.pad(yb, ((0, 0), (0, Kp - K), (0, 0)))

    x_map = (lambda b, i, j, k: (b, i, k)) if x_batched else (lambda b, i, j, k: (0, i, k))
    y_map = (lambda b, i, j, k: (b, k, j)) if y_batched else (lambda b, i, j, k: (0, k, j))

    cost = pl.CostEstimate(
        flops=2 * B * M * Kp * N,
        transcendentals=0,
        bytes_accessed=int(xb.size) * x_item + int(yb.size) * y_item
        + B * M * N * o_item)

    return pl.pallas_call(
        _tiled_mm_kernel,
        out_shape=jax.ShapeDtypeStruct((B, M, N), out_dtype),
        grid_spec=pltpu.PrefetchScalarGridSpec(
            num_scalar_prefetch=0,
            grid=(B, pl.cdiv(M, tm), pl.cdiv(N, tn), Kp // tk),
            in_specs=[
                pl.BlockSpec((pl.Squeezed(), tm, tk), x_map),
                pl.BlockSpec((pl.Squeezed(), tk, tn), y_map),
            ],
            out_specs=pl.BlockSpec((pl.Squeezed(), tm, tn),
                                   lambda b, i, j, k: (b, i, j)),
            scratch_shapes=[pltpu.VMEM((tm, tn), acc_dtype)],
        ),
        compiler_params=pltpu.CompilerParams(
            dimension_semantics=("parallel", "parallel", "parallel", "arbitrary"),
            vmem_limit_bytes=vmem_limit),
        cost_estimate=cost,
    )(xb, yb)


# ---------------------------------------------------------------------------
# torch.matmul wrapper (1-D promotion + batch broadcasting)
# ---------------------------------------------------------------------------
def matmul(x, y):
    x = jnp.asarray(x)
    y = jnp.asarray(y)

    squeeze_m = squeeze_n = False
    if x.ndim == 1:
        x = x[None, :]
        squeeze_m = True
    if y.ndim == 1:
        y = y[:, None]
        squeeze_n = True

    M, K = x.shape[-2], x.shape[-1]
    K2, N = y.shape[-2], y.shape[-1]
    assert K == K2, f"inner dims mismatch: {K} vs {K2}"

    x_bshape = x.shape[:-2]
    y_bshape = y.shape[:-2]
    batch_shape = jnp.broadcast_shapes(x_bshape, y_bshape)
    B = math.prod(batch_shape) if batch_shape else 1

    out_dtype = jnp.result_type(x.dtype, y.dtype)
    # Integer matmuls accumulate in int32 (hits the int MXU path on v5e/v6e).
    # TODO(synk): v7x's MXU has no int8/int4 path, so integer inputs fall off
    # the MXU there; consider a bf16/fp8 cast on v7x when bit-exactness is not
    # required.  f32 inputs use default MXU precision (bf16 multi-pass), same
    # as before; true-fp32 callers would need precision=HIGHEST (3-6x MXU cost).
    acc_dtype = jnp.int32 if jnp.issubdtype(out_dtype, jnp.integer) else jnp.float32

    def _prep(a, a_bshape, rows, cols):
        """Returns (array shaped (Ba, rows, cols), is_batched)."""
        nb = math.prod(a_bshape) if a_bshape else 1
        if nb == 1:
            # Shared across the batch: keep ONE physical HBM copy; the
            # kernel's index_map re-uses it every grid step.
            return a.reshape(1, rows, cols), False
        if a_bshape == batch_shape:
            return a.reshape(B, rows, cols), True
        # Rare partial-broadcast case (e.g. (1,4) vs (2,4)).
        # TODO(synk): could be expressed with index_map arithmetic instead of
        # materializing the broadcast.
        a = jnp.broadcast_to(a, batch_shape + (rows, cols))
        return a.reshape(B, rows, cols), True

    xb, x_batched = _prep(x, x_bshape, M, K)
    yb, y_batched = _prep(y, y_bshape, K, N)
    if not x_batched and not y_batched:
        x_batched = True  # plain 2-D matmul: treat x as the (size-1) batch

    per_b = (M * K * xb.dtype.itemsize + K * N * yb.dtype.itemsize
             + M * N * jnp.dtype(out_dtype).itemsize)
    if per_b <= _SMALL_BLOCK_BYTES:
        out = _small_matmul(xb, yb, x_batched, y_batched, B, M, K, N,
                            out_dtype, acc_dtype)
    else:
        out = _tiled_matmul(xb, yb, x_batched, y_batched, B, M, K, N,
                            out_dtype, acc_dtype)

    out = out.reshape(batch_shape + (M, N))
    if squeeze_m:
        out = out[..., 0, :]
    if squeeze_n:
        out = out[..., 0]
    return out


if __name__ == "__main__":
    key = jax.random.PRNGKey(0)
    kx, ky = jax.random.split(key)

    # 1) Batched matmul (both operands batched) -> small path, einsum kernel.
    x = jax.random.normal(kx, (2, 4, 16, 32), dtype=jnp.float32)
    y = jax.random.normal(ky, (2, 4, 32, 16), dtype=jnp.float32)
    out = jax.block_until_ready(matmul(x, y))
    ref = jnp.matmul(x, y)
    assert out.shape == ref.shape, (out.shape, ref.shape)
    assert jnp.allclose(out, ref, atol=1e-4, rtol=1e-4), "batched matmul mismatch"

    # 2) Shared 2-D y across the batch -> collapsed (bT*M, K) @ (K, N) kernel.
    y2 = jax.random.normal(ky, (32, 16), dtype=jnp.float32)
    out2 = jax.block_until_ready(matmul(x, y2))
    ref2 = jnp.matmul(x, y2)
    assert out2.shape == ref2.shape, (out2.shape, ref2.shape)
    assert jnp.allclose(out2, ref2, atol=1e-4, rtol=1e-4), "shared-y matmul mismatch"

    # 3) Shared 2-D x against a batched y -> unrolled per-batch dot kernel.
    x2 = jax.random.normal(kx, (16, 32), dtype=jnp.float32)
    out3 = jax.block_until_ready(matmul(x2, y))
    ref3 = jnp.matmul(x2, y)
    assert out3.shape == ref3.shape, (out3.shape, ref3.shape)
    assert jnp.allclose(out3, ref3, atol=1e-4, rtol=1e-4), "shared-x matmul mismatch"

    # 4) Larger 2-D case exercising the tiled (M,N,K) path: non-divisible M/N
    #    handled via block masking (no HBM padding), guarded last-K store.
    xl = jax.random.normal(kx, (768, 1024), dtype=jnp.float32)
    yl = jax.random.normal(ky, (1024, 896), dtype=jnp.float32)
    out4 = jax.block_until_ready(matmul(xl, yl))
    ref4 = jnp.matmul(xl, yl, precision=jax.lax.Precision.HIGHEST)
    assert out4.shape == ref4.shape, (out4.shape, ref4.shape)
    assert jnp.allclose(out4, ref4, atol=2e-1, rtol=2e-2), "tiled matmul mismatch"

    print("KERNEL_OK")
</pallas_src>

<mosaic_0001>
module attributes {stable_mosaic.version = 11 : i64} {
  func.func @_small_bmm_both_kernel(%arg0: i32, %arg1: memref<8x16x32xf32, #tpu.memory_space<vmem>>, %arg2: memref<8x32x16xf32, #tpu.memory_space<vmem>>, %arg3: memref<8x16x16xf32, #tpu.memory_space<vmem>>) attributes {dimension_semantics = [#tpu.dimension_semantics<parallel>], iteration_bounds = array<i64: 1>, scalar_prefetch = 0 : i64, scratch_operands = 0 : i64, tpu.core_type = #tpu.core_type<tc>, window_params = [{transform_indices = @transform_0, window_bounds = array<i64: 8, 16, 32>}, {transform_indices = @transform_1, window_bounds = array<i64: 8, 32, 16>}, {transform_indices = @transform_2, window_bounds = array<i64: 8, 16, 16>}]} {
    %c0 = arith.constant 0 : index
    %c0_0 = arith.constant 0 : index
    %c0_1 = arith.constant 0 : index
    %0 = vector.load %arg1[%c0, %c0_0, %c0_1] : memref<8x16x32xf32, #tpu.memory_space<vmem>>, vector<8x16x32xf32>
    %c0_2 = arith.constant 0 : index
    %c0_3 = arith.constant 0 : index
    %c0_4 = arith.constant 0 : index
    %1 = vector.load %arg2[%c0_2, %c0_3, %c0_4] : memref<8x32x16xf32, #tpu.memory_space<vmem>>, vector<8x32x16xf32>
    "tpu.trace_start"() <{level = 10 : i32, message = "bmk,bkn->bmn"}> : () -> ()
    %cst = arith.constant dense<0.000000e+00> : vector<8x16x16xf32>
    %2 = tpu.matmul %0, %1, %cst {dimension_numbers = #tpu.dot_dimension_numbers<[2], [1], [1], [2], [0, 0, 0, 1, 1, 2], [0], [0]>} : vector<8x16x32xf32>, vector<8x32x16xf32>, vector<8x16x16xf32> -> vector<8x16x16xf32>
    "tpu.trace_stop"() : () -> ()
    %c0_5 = arith.constant 0 : index
    %c0_6 = arith.constant 0 : index
    %c0_7 = arith.constant 0 : index
    %3 = vector.load %arg3[%c0_5, %c0_6, %c0_7] : memref<8x16x16xf32, #tpu.memory_space<vmem>>, vector<8x16x16xf32>
    tpu.vector_store %arg3[%c0_5, %c0_6, %c0_7], %2 {strides = array<i32>} : memref<8x16x16xf32, #tpu.memory_space<vmem>>, vector<8x16x16xf32>,
    return
  }
  func.func @transform_0(%arg0: i32) -> (i32, i32, i32) {
    %c0_i32 = arith.constant 0 : i32
    %c0_i32_0 = arith.constant 0 : i32
    %c0_i32_1 = arith.constant 0 : i32
    return %arg0, %c0_i32, %c0_i32_0 : i32, i32, i32
  }
  func.func @transform_1(%arg0: i32) -> (i32, i32, i32) {
    %c0_i32 = arith.constant 0 : i32
    %c0_i32_0 = arith.constant 0 : i32
    %c0_i32_1 = arith.constant 0 : i32
    return %arg0, %c0_i32, %c0_i32_0 : i32, i32, i32
  }
  func.func @transform_2(%arg0: i32) -> (i32, i32, i32) {
    %c0_i32 = arith.constant 0 : i32
    %c0_i32_0 = arith.constant 0 : i32
    %c0_i32_1 = arith.constant 0 : i32
    return %arg0, %c0_i32, %c0_i32_0 : i32, i32, i32
  }
}

</mosaic_0001>

<llo_original>
// kernel: tpu_custom_call.1
$region0: #{tpu_custom_call.1}
  #allocation0 [shape = 'u32[]', space=smem, size = 0x4, offset = 0x4, fixed_abs, tag = 'smem constant byte address 0x4 - core index']
  #allocation1 [shape = 'u32[144,128]{1,0:T(1,128)}', space=vmem, size = 0x12000, scoped, tag = 'internal scratch']
  %s0 = inlined_call_operand.vmem [shape: f32[8,16,32], index: 0, kind: input, shape index: {}]
  %s1 = inlined_call_operand.vmem [shape: f32[8,32,16], index: 1, kind: input, shape index: {}]
  %s2 = inlined_call_operand.hbm [shape: f32[8,16,16], index: 2, kind: output, shape index: {}]
  %s3 = sld [smem:[#allocation0]]
  $region18: #{tpu_custom_call.1} parent=0
    _
  %s5 = ssub.s32 1, %s3
  %s6 = scalar_select 0, %s5, %s3
  $region1: #{tpu_custom_call.1} parent=0
    #allocation2 [shape = 'u8[65536]{0}', space=vmem, size = 0x10000, scoped, tag = 'output window, operand 0, single buffered']
    #allocation3 [shape = 's32[1]{0}', space=sflag, size = 0x4, scoped, tag = 'scoped memory for tpu_custom_call.1']
    %7 = vsyncpa [#allocation3], 0
    // Predicated region
    $region2: #{tpu_custom_call.1} parent=1 // pred_check
      _
    $region3: #{tpu_custom_call.1} parent=1 // pred_check_branch
      %9 = sbr.rel (0) target = $region5
    $region4: #{tpu_custom_call.1} parent=1 // pred_region
      _
    $region5: #{tpu_custom_call.1} parent=1 // pred_fallthru
      _
    // Predicated region
    $region6: #{tpu_custom_call.1} parent=1 // pred_check
      _
    $region7: #{tpu_custom_call.1} parent=1 // pred_check_branch
      %11 = sbr.rel (0) target = $region9
    $region8: #{tpu_custom_call.1} parent=1 // pred_region
      _
    $region9: #{tpu_custom_call.1} parent=1 // pred_fallthru
      _
    %v12 = vld [vmem:[%s0] sm:$0xff]
    %v13 = vld [vmem:[%s0 + $0x8] sm:$0xff]
    %v14 = vld [vmem:[%s0 + $0x10] sm:$0xff]
    %v15 = vld [vmem:[%s0 + $0x18] sm:$0xff]
    %v16 = vld [vmem:[%s0 + $0x20] sm:$0xff]
    %v17 = vld [vmem:[%s0 + $0x28] sm:$0xff]
    %v18 = vld [vmem:[%s0 + $0x30] sm:$0xff]
    %v19 = vld [vmem:[%s0 + $0x38] sm:$0xff]
    %v20 = vld [vmem:[%s0 + $0x40] sm:$0xff]
    %v21 = vld [vmem:[%s0 + $0x48] sm:$0xff]
    %v22 = vld [vmem:[%s0 + $0x50] sm:$0xff]
    %v23 = vld [vmem:[%s0 + $0x58] sm:$0xff]
    %v24 = vld [vmem:[%s0 + $0x60] sm:$0xff]
    %v25 = vld [vmem:[%s0 + $0x68] sm:$0xff]
    %v26 = vld [vmem:[%s0 + $0x70] sm:$0xff]
    %v27 = vld [vmem:[%s0 + $0x78] sm:$0xff]
    %v28 = vld [vmem:[%s1] sm:$0xff]
    %v29 = vld [vmem:[%s1 + $0x8] sm:$0xff]
    %v30 = vld [vmem:[%s1 + $0x10] sm:$0xff]
    %v31 = vld [vmem:[%s1 + $0x18] sm:$0xff]
    %v32 = vld [vmem:[%s1 + $0x20] sm:$0xff]
    %v33 = vld [vmem:[%s1 + $0x28] sm:$0xff]
    %v34 = vld [vmem:[%s1 + $0x30] sm:$0xff]
    %v35 = vld [vmem:[%s1 + $0x38] sm:$0xff]
    %v36 = vld [vmem:[%s1 + $0x40] sm:$0xff]
    %v37 = vld [vmem:[%s1 + $0x48] sm:$0xff]
    %v38 = vld [vmem:[%s1 + $0x50] sm:$0xff]
    %v39 = vld [vmem:[%s1 + $0x58] sm:$0xff]
    %v40 = vld [vmem:[%s1 + $0x60] sm:$0xff]
    %v41 = vld [vmem:[%s1 + $0x68] sm:$0xff]
    %v42 = vld [vmem:[%s1 + $0x70] sm:$0xff]
    %v43 = vld [vmem:[%s1 + $0x78] sm:$0xff]
    %v44 = vld [vmem:[%s1 + $0x80] sm:$0xff]
    %v45 = vld [vmem:[%s1 + $0x88] sm:$0xff]
    %v46 = vld [vmem:[%s1 + $0x90] sm:$0xff]
    %v47 = vld [vmem:[%s1 + $0x98] sm:$0xff]
    %v48 = vld [vmem:[%s1 + $0xa0] sm:$0xff]
    %v49 = vld [vmem:[%s1 + $0xa8] sm:$0xff]
    %v50 = vld [vmem:[%s1 + $0xb0] sm:$0xff]
    %v51 = vld [vmem:[%s1 + $0xb8] sm:$0xff]
    %v52 = vld [vmem:[%s1 + $0xc0] sm:$0xff]
    %v53 = vld [vmem:[%s1 + $0xc8] sm:$0xff]
    %v54 = vld [vmem:[%s1 + $0xd0] sm:$0xff]
    %v55 = vld [vmem:[%s1 + $0xd8] sm:$0xff]
    %v56 = vld [vmem:[%s1 + $0xe0] sm:$0xff]
    %v57 = vld [vmem:[%s1 + $0xe8] sm:$0xff]
    %v58 = vld [vmem:[%s1 + $0xf0] sm:$0xff]
    %v59 = vld [vmem:[%s1 + $0xf8] sm:$0xff]
    %vm60 = vcmask 261120
    %v62 = vsel %vm60, %v12, 0
    %v65 = vsel %vm60, %v13, 0
    %67 = vmatprep.subr.mxu0 0.0
    %68 = vmatpush1.msra.mxu0 %v28
    %69 = vmatprep.subr.mxu0 0.0
    %70 = vmatpush1.msra.mxu0 %v29
    %71 = vmatprep.subr.mxu0 0.0
    %72 = vmatpush1.msra.mxu0 %v30
    %73 = vmatprep.subr.mxu0 0.0
    %74 = vmatpush1.msra.mxu0 %v31
    %75 = vmatprep.subr.mxu0 0.0
    %76 = vmatpush1.msra.mxu0 0.0
    %77 = vmatprep.subr.mxu0 0.0
    %78 = vmatpush1.msra.mxu0 0.0
    %79 = vmatprep.subr.mxu0 0.0
    %80 = vmatpush1.msra.mxu0 0.0
    %81 = vmatprep.subr.mxu0 0.0
    %82 = vmatpush1.msra.mxu0 0.0
    %83 = vmatprep.subr.mxu0 0.0
    %84 = vmatpush1.msra.mxu0 0.0
    %85 = vmatprep.subr.mxu0 0.0
    %86 = vmatpush1.msra.mxu0 0.0
    %87 = vmatprep.subr.mxu0 0.0
    %88 = vmatpush1.msra.mxu0 0.0
    %89 = vmatprep.subr.mxu0 0.0
    %90 = vmatpush1.msra.mxu0 0.0
    %91 = vmatprep.subr.mxu0 0.0
    %92 = vmatpush1.msra.mxu0 0.0
    %93 = vmatprep.subr.mxu0 0.0
    %94 = vmatpush1.msra.mxu0 0.0
    %95 = vmatprep.subr.mxu0 0.0
    %96 = vmatpush1.msra.mxu0 0.0
    %97 = vmatprep.subr.mxu0 0.0
    %98 = vmatpush1.msra.mxu0 0.0
    %99 = vmatprep.subr.mxu0 0.0
    %100 = vmatpush1.msra.mxu0 0.0
    %101 = vmatprep.subr.mxu0 0.0
    %102 = vmatpush1.msra.mxu0 0.0
    %103 = vmatprep.subr.mxu0 0.0
    %104 = vmatpush1.msra.mxu0 0.0
    %105 = vmatprep.subr.mxu0 0.0
    %106 = vmatpush1.msra.mxu0 0.0
    %107 = vmatprep.subr.mxu0 0.0
    %108 = vmatpush1.msra.mxu0 0.0
    %109 = vmatprep.subr.mxu0 0.0
    %110 = vmatpush1.msra.mxu0 0.0
    %111 = vmatprep.subr.mxu0 0.0
    %112 = vmatpush1.msra.mxu0 0.0
    %113 = vmatprep.subr.mxu0 0.0
    %114 = vmatpush1.msra.mxu0 0.0
    %115 = vmatprep.subr.mxu0 0.0
    %116 = vmatpush1.msra.mxu0 0.0
    %117 = vmatprep.subr.mxu0 0.0
    %118 = vmatpush1.msra.mxu0 0.0
    %119 = vmatprep.subr.mxu0 0.0
    %120 = vmatpush1.msra.mxu0 0.0
    %121 = vmatprep.subr.mxu0 0.0
    %122 = vmatpush1.msra.mxu0 0.0
    %123 = vmatprep.subr.mxu0 0.0
    %124 = vmatpush1.msra.mxu0 0.0
    %125 = vmatprep.subr.mxu0 0.0
    %126 = vmatpush1.msra.mxu0 0.0
    %127 = vmatprep.subr.mxu0 0.0
    %128 = vmatpush1.msra.mxu0 0.0
    %129 = vmatprep.subr.mxu0 0.0
    %130 = vmatpush1.msra.mxu0 0.0
    %131 = vmatprep.mubr.f32.mxu0 0.0
    %132 = vmatmul.mubr.f32.gmra.mrb[0].mxu0 %v62
    %v133 = vpop.f32.mrb[0].mxu0
    %v134 = vadd.f32 0.0, %v133
    %v135 = vpop.f32.mrb[0].mxu0
    %136 = vmatprep.mubr.f32.mxu0 0.0
    %137 = vmatmul.mubr.f32.gmra.mrb[0].mxu0 %v65
    %v138 = vpop.f32.mrb[0].mxu0
    %v139 = vadd.f32 0.0, %v138
    %v140 = vpop.f32.mrb[0].mxu0
    %141 = vdwg.mxu0
    %v143 = vsel %vm60, %v14, 0
    %v146 = vsel %vm60, %v15, 0
    %148 = vmatprep.subr.mxu0 0.0
    %149 = vmatpush1.msra.mxu0 %v32
    %150 = vmatprep.subr.mxu0 0.0
    %151 = vmatpush1.msra.mxu0 %v33
    %152 = vmatprep.subr.mxu0 0.0
    %153 = vmatpush1.msra.mxu0 %v34
    %154 = vmatprep.subr.mxu0 0.0
    %155 = vmatpush1.msra.mxu0 %v35
    %156 = vmatprep.subr.mxu0 0.0
    %157 = vmatpush1.msra.mxu0 0.0
    %158 = vmatprep.subr.mxu0 0.0
    %159 = vmatpush1.msra.mxu0 0.0
    %160 = vmatprep.subr.mxu0 0.0
    %161 = vmatpush1.msra.mxu0 0.0
    %162 = vmatprep.subr.mxu0 0.0
    %163 = vmatpush1.msra.mxu0 0.0
    %164 = vmatprep.subr.mxu0 0.0
    %165 = vmatpush1.msra.mxu0 0.0
    %166 = vmatprep.subr.mxu0 0.0
    %167 = vmatpush1.msra.mxu0 0.0
    %168 = vmatprep.subr.mxu0 0.0
    %169 = vmatpush1.msra.mxu0 0.0
    %170 = vmatprep.subr.mxu0 0.0
    %171 = vmatpush1.msra.mxu0 0.0
    %172 = vmatprep.subr.mxu0 0.0
    %173 = vmatpush1.msra.mxu0 0.0
    %174 = vmatprep.subr.mxu0 0.0
    %175 = vmatpush1.msra.mxu0 0.0
    %176 = vmatprep.subr.mxu0 0.0
    %177 = vmatpush1.msra.mxu0 0.0
    %178 = vmatprep.subr.mxu0 0.0
    %179 = vmatpush1.msra.mxu0 0.0
    %180 = vmatprep.subr.mxu0 0.0
    %181 = vmatpush1.msra.mxu0 0.0
    %182 = vmatprep.subr.mxu0 0.0
    %183 = vmatpush1.msra.mxu0 0.0
    %184 = vmatprep.subr.mxu0 0.0
    %185 = vmatpush1.msra.mxu0 0.0
    %186 = vmatprep.subr.mxu0 0.0
    %187 = vmatpush1.msra.mxu0 0.0
    %188 = vmatprep.subr.mxu0 0.0
    %189 = vmatpush1.msra.mxu0 0.0
    %190 = vmatprep.subr.mxu0 0.0
    %191 = vmatpush1.msra.mxu0 0.0
    %192 = vmatprep.subr.mxu0 0.0
    %193 = vmatpush1.msra.mxu0 0.0
    %194 = vmatprep.subr.mxu0 0.0
    %195 = vmatpush1.msra.mxu0 0.0
    %196 = vmatprep.subr.mxu0 0.0
    %197 = vmatpush1.msra.mxu0 0.0
    %198 = vmatprep.subr.mxu0 0.0
    %199 = vmatpush1.msra.mxu0 0.0
    %200 = vmatprep.subr.mxu0 0.0
    %201 = vmatpush1.msra.mxu0 0.0
    %202 = vmatprep.subr.mxu0 0.0
    %203 = vmatpush1.msra.mxu0 0.0
    %204 = vmatprep.subr.mxu0 0.0
    %205 = vmatpush1.msra.mxu0 0.0
    %206 = vmatprep.subr.mxu0 0.0
    %207 = vmatpush1.msra.mxu0 0.0
    %208 = vmatprep.subr.mxu0 0.0
    %209 = vmatpush1.msra.mxu0 0.0
    %210 = vmatprep.subr.mxu0 0.0
    %211 = vmatpush1.msra.mxu0 0.0
    %212 = vmatprep.mubr.f32.mxu0 0.0
    %213 = vmatmul.mubr.f32.gmra.mrb[0].mxu0 %v143
    %v214 = vpop.f32.mrb[0].mxu0
    %v215 = vadd.f32 0.0, %v214
    %v216 = vpop.f32.mrb[0].mxu0
    %217 = vmatprep.mubr.f32.mxu0 0.0
    %218 = vmatmul.mubr.f32.gmra.mrb[0].mxu0 %v146
    %v219 = vpop.f32.mrb[0].mxu0
    %v220 = vadd.f32 0.0, %v219
    %v221 = vpop.f32.mrb[0].mxu0
    %222 = vdwg.mxu0
    %v224 = vsel %vm60, %v16, 0
    %v227 = vsel %vm60, %v17, 0
    %229 = vmatprep.subr.mxu0 0.0
    %230 = vmatpush1.msra.mxu0 %v36
    %231 = vmatprep.subr.mxu0 0.0
    %232 = vmatpush1.msra.mxu0 %v37
    %233 = vmatprep.subr.mxu0 0.0
    %234 = vmatpush1.msra.mxu0 %v38
    %235 = vmatprep.subr.mxu0 0.0
    %236 = vmatpush1.msra.mxu0 %v39
    %237 = vmatprep.subr.mxu0 0.0
    %238 = vmatpush1.msra.mxu0 0.0
    %239 = vmatprep.subr.mxu0 0.0
    %240 = vmatpush1.msra.mxu0 0.0
    %241 = vmatprep.subr.mxu0 0.0
    %242 = vmatpush1.msra.mxu0 0.0
    %243 = vmatprep.subr.mxu0 0.0
    %244 = vmatpush1.msra.mxu0 0.0
    %245 = vmatprep.subr.mxu0 0.0
    %246 = vmatpush1.msra.mxu0 0.0
    %247 = vmatprep.subr.mxu0 0.0
    %248 = vmatpush1.msra.mxu0 0.0
    %249 = vmatprep.subr.mxu0 0.0
    %250 = vmatpush1.msra.mxu0 0.0
    %251 = vmatprep.subr.mxu0 0.0
    %252 = vmatpush1.msra.mxu0 0.0
    %253 = vmatprep.subr.mxu0 0.0
    %254 = vmatpush1.msra.mxu0 0.0
    %255 = vmatprep.subr.mxu0 0.0
    %256 = vmatpush1.msra.mxu0 0.0
    %257 = vmatprep.subr.mxu0 0.0
    %258 = vmatpush1.msra.mxu0 0.0
    %259 = vmatprep.subr.mxu0 0.0
    %260 = vmatpush1.msra.mxu0 0.0
    %261 = vmatprep.subr.mxu0 0.0
    %262 = vmatpush1.msra.mxu0 0.0
    %263 = vmatprep.subr.mxu0 0.0
    %264 = vmatpush1.msra.mxu0 0.0
    %265 = vmatprep.subr.mxu0 0.0
    %266 = vmatpush1.msra.mxu0 0.0
    %267 = vmatprep.subr.mxu0 0.0
    %268 = vmatpush1.msra.mxu0 0.0
    %269 = vmatprep.subr.mxu0 0.0
    %270 = vmatpush1.msra.mxu0 0.0
    %271 = vmatprep.subr.mxu0 0.0
    %272 = vmatpush1.msra.mxu0 0.0
    %273 = vmatprep.subr.mxu0 0.0
    %274 = vmatpush1.msra.mxu0 0.0
    %275 = vmatprep.subr.mxu0 0.0
    %276 = vmatpush1.msra.mxu0 0.0
    %277 = vmatprep.subr.mxu0 0.0
    %278 = vmatpush1.msra.mxu0 0.0
    %279 = vmatprep.subr.mxu0 0.0
    %280 = vmatpush1.msra.mxu0 0.0
    %281 = vmatprep.subr.mxu0 0.0
    %282 = vmatpush1.msra.mxu0 0.0
    %283 = vmatprep.subr.mxu0 0.0
    %284 = vmatpush1.msra.mxu0 0.0
    %285 = vmatprep.subr.mxu0 0.0
    %286 = vmatpush1.msra.mxu0 0.0
    %287 = vmatprep.subr.mxu0 0.0
    %288 = vmatpush1.msra.mxu0 0.0
    %289 = vmatprep.subr.mxu0 0.0
    %290 = vmatpush1.msra.mxu0 0.0
    %291 = vmatprep.subr.mxu0 0.0
    %292 = vmatpush1.msra.mxu0 0.0
    %293 = vmatprep.mubr.f32.mxu0 0.0
    %294 = vmatmul.mubr.f32.gmra.mrb[0].mxu0 %v224
    %v295 = vpop.f32.mrb[0].mxu0
    %v296 = vadd.f32 0.0, %v295
    %v297 = vpop.f32.mrb[0].mxu0
    %298 = vmatprep.mubr.f32.mxu0 0.0
    %299 = vmatmul.mubr.f32.gmra.mrb[0].mxu0 %v227
    %v300 = vpop.f32.mrb[0].mxu0
    %v301 = vadd.f32 0.0, %v300
    %v302 = vpop.f32.mrb[0].mxu0
    %303 = vdwg.mxu0
    %v305 = vsel %vm60, %v18, 0
    %v308 = vsel %vm60, %v19, 0
    %310 = vmatprep.subr.mxu0 0.0
    %311 = vmatpush1.msra.mxu0 %v40
    %312 = vmatprep.subr.mxu0 0.0
    %313 = vmatpush1.msra.mxu0 %v41
    %314 = vmatprep.subr.mxu0 0.0
    %315 = vmatpush1.msra.mxu0 %v42
    %316 = vmatprep.subr.mxu0 0.0
    %317 = vmatpush1.msra.mxu0 %v43
    %318 = vmatprep.subr.mxu0 0.0
    %319 = vmatpush1.msra.mxu0 0.0
    %320 = vmatprep.subr.mxu0 0.0
    %321 = vmatpush1.msra.mxu0 0.0
    %322 = vmatprep.subr.mxu0 0.0
    %323 = vmatpush1.msra.mxu0 0.0
    %324 = vmatprep.subr.mxu0 0.0
    %325 = vmatpush1.msra.mxu0 0.0
    %326 = vmatprep.subr.mxu0 0.0
    %327 = vmatpush1.msra.mxu0 0.0
    %328 = vmatprep.subr.mxu0 0.0
    %329 = vmatpush1.msra.mxu0 0.0
    %330 = vmatprep.subr.mxu0 0.0
    %331 = vmatpush1.msra.mxu0 0.0
    %332 = vmatprep.subr.mxu0 0.0
    %333 = vmatpush1.msra.mxu0 0.0
    %334 = vmatprep.subr.mxu0 0.0
    %335 = vmatpush1.msra.mxu0 0.0
    %336 = vmatprep.subr.mxu0 0.0
    %337 = vmatpush1.msra.mxu0 0.0
    %338 = vmatprep.subr.mxu0 0.0
    %339 = vmatpush1.msra.mxu0 0.0
    %340 = vmatprep.subr.mxu0 0.0
    %341 = vmatpush1.msra.mxu0 0.0
    %342 = vmatprep.subr.mxu0 0.0
    %343 = vmatpush1.msra.mxu0 0.0
    %344 = vmatprep.subr.mxu0 0.0
    %345 = vmatpush1.msra.mxu0 0.0
    %346 = vmatprep.subr.mxu0 0.0
    %347 = vmatpush1.msra.mxu0 0.0
    %348 = vmatprep.subr.mxu0 0.0
    %349 = vmatpush1.msra.mxu0 0.0
    %350 = vmatprep.subr.mxu0 0.0
    %351 = vmatpush1.msra.mxu0 0.0
    %352 = vmatprep.subr.mxu0 0.0
    %353 = vmatpush1.msra.mxu0 0.0
    %354 = vmatprep.subr.mxu0 0.0
    %355 = vmatpush1.msra.mxu0 0.0
    %356 = vmatprep.subr.mxu0 0.0
    %357 = vmatpush1.msra.mxu0 0.0
    %358 = vmatprep.subr.mxu0 0.0
    %359 = vmatpush1.msra.mxu0 0.0
    %360 = vmatprep.subr.mxu0 0.0
    %361 = vmatpush1.msra.mxu0 0.0
    %362 = vmatprep.subr.mxu0 0.0
    %363 = vmatpush1.msra.mxu0 0.0
    %364 = vmatprep.subr.mxu0 0.0
    %365 = vmatpush1.msra.mxu0 0.0
    %366 = vmatprep.subr.mxu0 0.0
    %367 = vmatpush1.msra.mxu0 0.0
    %368 = vmatprep.subr.mxu0 0.0
    %369 = vmatpush1.msra.mxu0 0.0
    %370 = vmatprep.subr.mxu0 0.0
    %371 = vmatpush1.msra.mxu0 0.0
    %372 = vmatprep.subr.mxu0 0.0
    %373 = vmatpush1.msra.mxu0 0.0
    %374 = vmatprep.mubr.f32.mxu0 0.0
    %375 = vmatmul.mubr.f32.gmra.mrb[0].mxu0 %v305
    %v376 = vpop.f32.mrb[0].mxu0
    %v377 = vadd.f32 0.0, %v376
    %v378 = vpop.f32.mrb[0].mxu0
    %379 = vmatprep.mubr.f32.mxu0 0.0
    %380 = vmatmul.mubr.f32.gmra.mrb[0].mxu0 %v308
    %v381 = vpop.f32.mrb[0].mxu0
    %v382 = vadd.f32 0.0, %v381
    %v383 = vpop.f32.mrb[0].mxu0
    %384 = vdwg.mxu0
    %v386 = vsel %vm60, %v20, 0
    %v389 = vsel %vm60, %v21, 0
    %391 = vmatprep.subr.mxu0 0.0
    %392 = vmatpush1.msra.mxu0 %v44
    %393 = vmatprep.subr.mxu0 0.0
    %394 = vmatpush1.msra.mxu0 %v45
    %395 = vmatprep.subr.mxu0 0.0
    %396 = vmatpush1.msra.mxu0 %v46
    %397 = vmatprep.subr.mxu0 0.0
    %398 = vmatpush1.msra.mxu0 %v47
    %399 = vmatprep.subr.mxu0 0.0
    %400 = vmatpush1.msra.mxu0 0.0
    %401 = vmatprep.subr.mxu0 0.0
    %402 = vmatpush1.msra.mxu0 0.0
    %403 = vmatprep.subr.mxu0 0.0
    %404 = vmatpush1.msra.mxu0 0.0
    %405 = vmatprep.subr.mxu0 0.0
    %406 = vmatpush1.msra.mxu0 0.0
    %407 = vmatprep.subr.mxu0 0.0
    %408 = vmatpush1.msra.mxu0 0.0
    %409 = vmatprep.subr.mxu0 0.0
    %410 = vmatpush1.msra.mxu0 0.0
    %411 = vmatprep.subr.mxu0 0.0
    %412 = vmatpush1.msra.mxu0 0.0
    %413 = vmatprep.subr.mxu0 0.0
    %414 = vmatpush1.msra.mxu0 0.0
    %415 = vmatprep.subr.mxu0 0.0
    %416 = vmatpush1.msra.mxu0 0.0
    %417 = vmatprep.subr.mxu0 0.0
    %418 = vmatpush1.msra.mxu0 0.0
    %419 = vmatprep.subr.mxu0 0.0
    %420 = vmatpush1.msra.mxu0 0.0
    %421 = vmatprep.subr.mxu0 0.0
    %422 = vmatpush1.msra.mxu0 0.0
    %423 = vmatprep.subr.mxu0 0.0
    %424 = vmatpush1.msra.mxu0 0.0
    %425 = vmatprep.subr.mxu0 0.0
    %426 = vmatpush1.msra.mxu0 0.0
    %427 = vmatprep.subr.mxu0 0.0
    %428 = vmatpush1.msra.mxu0 0.0
    %429 = vmatprep.subr.mxu0 0.0
    %430 = vmatpush1.msra.mxu0 0.0
    %431 = vmatprep.subr.mxu0 0.0
    %432 = vmatpush1.msra.mxu0 0.0
    %433 = vmatprep.subr.mxu0 0.0
    %434 = vmatpush1.msra.mxu0 0.0
    %435 = vmatprep.subr.mxu0 0.0
    %436 = vmatpush1.msra.mxu0 0.0
    %437 = vmatprep.subr.mxu0 0.0
    %438 = vmatpush1.msra.mxu0 0.0
    %439 = vmatprep.subr.mxu0 0.0
    %440 = vmatpush1.msra.mxu0 0.0
    %441 = vmatprep.subr.mxu0 0.0
    %442 = vmatpush1.msra.mxu0 0.0
    %443 = vmatprep.subr.mxu0 0.0
    %444 = vmatpush1.msra.mxu0 0.0
    %445 = vmatprep.subr.mxu0 0.0
    %446 = vmatpush1.msra.mxu0 0.0
    %447 = vmatprep.subr.mxu0 0.0
    %448 = vmatpush1.msra.mxu0 0.0
    %449 = vmatprep.subr.mxu0 0.0
    %450 = vmatpush1.msra.mxu0 0.0
    %451 = vmatprep.subr.mxu0 0.0
    %452 = vmatpush1.msra.mxu0 0.0
    %453 = vmatprep.subr.mxu0 0.0
    %454 = vmatpush1.msra.mxu0 0.0
    %455 = vmatprep.mubr.f32.mxu0 0.0
    %456 = vmatmul.mubr.f32.gmra.mrb[0].mxu0 %v386
    %v457 = vpop.f32.mrb[0].mxu0
    %v458 = vadd.f32 0.0, %v457
    %v459 = vpop.f32.mrb[0].mxu0
    %460 = vmatprep.mubr.f32.mxu0 0.0
    %461 = vmatmul.mubr.f32.gmra.mrb[0].mxu0 %v389
    %v462 = vpop.f32.mrb[0].mxu0
    %v463 = vadd.f32 0.0, %v462
    %v464 = vpop.f32.mrb[0].mxu0
    %465 = vdwg.mxu0
    %v467 = vsel %vm60, %v22, 0
    %v470 = vsel %vm60, %v23, 0
    %472 = vmatprep.subr.mxu0 0.0
    %473 = vmatpush1.msra.mxu0 %v48
    %474 = vmatprep.subr.mxu0 0.0
    %475 = vmatpush1.msra.mxu0 %v49
    %476 = vmatprep.subr.mxu0 0.0
    %477 = vmatpush1.msra.mxu0 %v50
    %478 = vmatprep.subr.mxu0 0.0
    %479 = vmatpush1.msra.mxu0 %v51
    %480 = vmatprep.subr.mxu0 0.0
    %481 = vmatpush1.msra.mxu0 0.0
    %482 = vmatprep.subr.mxu0 0.0
    %483 = vmatpush1.msra.mxu0 0.0
    %484 = vmatprep.subr.mxu0 0.0
    %485 = vmatpush1.msra.mxu0 0.0
    %486 = vmatprep.subr.mxu0 0.0
    %487 = vmatpush1.msra.mxu0 0.0
    %488 = vmatprep.subr.mxu0 0.0
    %489 = vmatpush1.msra.mxu0 0.0
    %490 = vmatprep.subr.mxu0 0.0
    %491 = vmatpush1.msra.mxu0 0.0
    %492 = vmatprep.subr.mxu0 0.0
    %493 = vmatpush1.msra.mxu0 0.0
    %494 = vmatprep.subr.mxu0 0.0
    %495 = vmatpush1.msra.mxu0 0.0
    %496 = vmatprep.subr.mxu0 0.0
    %497 = vmatpush1.msra.mxu0 0.0
    %498 = vmatprep.subr.mxu0 0.0
    %499 = vmatpush1.msra.mxu0 0.0
    %500 = vmatprep.subr.mxu0 0.0
    %501 = vmatpush1.msra.mxu0 0.0
    %502 = vmatprep.subr.mxu0 0.0
    %503 = vmatpush1.msra.mxu0 0.0
    %504 = vmatprep.subr.mxu0 0.0
    %505 = vmatpush1.msra.mxu0 0.0
    %506 = vmatprep.subr.mxu0 0.0
    %507 = vmatpush1.msra.mxu0 0.0
    %508 = vmatprep.subr.mxu0 0.0
    %509 = vmatpush1.msra.mxu0 0.0
    %510 = vmatprep.subr.mxu0 0.0
    %511 = vmatpush1.msra.mxu0 0.0
    %512 = vmatprep.subr.mxu0 0.0
    %513 = vmatpush1.msra.mxu0 0.0
    %514 = vmatprep.subr.mxu0 0.0
    %515 = vmatpush1.msra.mxu0 0.0
    %516 = vmatprep.subr.mxu0 0.0
    %517 = vmatpush1.msra.mxu0 0.0
    %518 = vmatprep.subr.mxu0 0.0
    %519 = vmatpush1.msra.mxu0 0.0
    %520 = vmatprep.subr.mxu0 0.0
    %521 = vmatpush1.msra.mxu0 0.0
    %522 = vmatprep.subr.mxu0 0.0
    %523 = vmatpush1.msra.mxu0 0.0
    %524 = vmatprep.subr.mxu0 0.0
    %525 = vmatpush1.msra.mxu0 0.0
    %526 = vmatprep.subr.mxu0 0.0
    %527 = vmatpush1.msra.mxu0 0.0
    %528 = vmatprep.subr.mxu0 0.0
    %529 = vmatpush1.msra.mxu0 0.0
    %530 = vmatprep.subr.mxu0 0.0
    %531 = vmatpush1.msra.mxu0 0.0
    %532 = vmatprep.subr.mxu0 0.0
    %533 = vmatpush1.msra.mxu0 0.0
    %534 = vmatprep.subr.mxu0 0.0
    %535 = vmatpush1.msra.mxu0 0.0
    %536 = vmatprep.mubr.f32.mxu0 0.0
    %537 = vmatmul.mubr.f32.gmra.mrb[0].mxu0 %v467
    %v538 = vpop.f32.mrb[0].mxu0
    %v539 = vadd.f32 0.0, %v538
    %v540 = vpop.f32.mrb[0].mxu0
    %541 = vmatprep.mubr.f32.mxu0 0.0
    %542 = vmatmul.mubr.f32.gmra.mrb[0].mxu0 %v470
    %v543 = vpop.f32.mrb[0].mxu0
    %v544 = vadd.f32 0.0, %v543
    %v545 = vpop.f32.mrb[0].mxu0
    %546 = vdwg.mxu0
    %v548 = vsel %vm60, %v24, 0
    %v551 = vsel %vm60, %v25, 0
    %553 = vmatprep.subr.mxu0 0.0
    %554 = vmatpush1.msra.mxu0 %v52
    %555 = vmatprep.subr.mxu0 0.0
    %556 = vmatpush1.msra.mxu0 %v53
    %557 = vmatprep.subr.mxu0 0.0
    %558 = vmatpush1.msra.mxu0 %v54
    %559 = vmatprep.subr.mxu0 0.0
    %560 = vmatpush1.msra.mxu0 %v55
    %561 = vmatprep.subr.mxu0 0.0
    %562 = vmatpush1.msra.mxu0 0.0
    %563 = vmatprep.subr.mxu0 0.0
    %564 = vmatpush1.msra.mxu0 0.0
    %565 = vmatprep.subr.mxu0 0.0
    %566 = vmatpush1.msra.mxu0 0.0
    %567 = vmatprep.subr.mxu0 0.0
    %568 = vmatpush1.msra.mxu0 0.0
    %569 = vmatprep.subr.mxu0 0.0
    %570 = vmatpush1.msra.mxu0 0.0
    %571 = vmatprep.subr.mxu0 0.0
    %572 = vmatpush1.msra.mxu0 0.0
    %573 = vmatprep.subr.mxu0 0.0
    %574 = vmatpush1.msra.mxu0 0.0
    %575 = vmatprep.subr.mxu0 0.0
    %576 = vmatpush1.msra.mxu0 0.0
    %577 = vmatprep.subr.mxu0 0.0
    %578 = vmatpush1.msra.mxu0 0.0
    %579 = vmatprep.subr.mxu0 0.0
    %580 = vmatpush1.msra.mxu0 0.0
    %581 = vmatprep.subr.mxu0 0.0
    %582 = vmatpush1.msra.mxu0 0.0
    %583 = vmatprep.subr.mxu0 0.0
    %584 = vmatpush1.msra.mxu0 0.0
    %585 = vmatprep.subr.mxu0 0.0
    %586 = vmatpush1.msra.mxu0 0.0
    %587 = vmatprep.subr.mxu0 0.0
    %588 = vmatpush1.msra.mxu0 0.0
    %589 = vmatprep.subr.mxu0 0.0
    %590 = vmatpush1.msra.mxu0 0.0
    %591 = vmatprep.subr.mxu0 0.0
    %592 = vmatpush1.msra.mxu0 0.0
    %593 = vmatprep.subr.mxu0 0.0
    %594 = vmatpush1.msra.mxu0 0.0
    %595 = vmatprep.subr.mxu0 0.0
    %596 = vmatpush1.msra.mxu0 0.0
    %597 = vmatprep.subr.mxu0 0.0
    %598 = vmatpush1.msra.mxu0 0.0
    %599 = vmatprep.subr.mxu0 0.0
    %600 = vmatpush1.msra.mxu0 0.0
    %601 = vmatprep.subr.mxu0 0.0
    %602 = vmatpush1.msra.mxu0 0.0
    %603 = vmatprep.subr.mxu0 0.0
    %604 = vmatpush1.msra.mxu0 0.0
    %605 = vmatprep.subr.mxu0 0.0
    %606 = vmatpush1.msra.mxu0 0.0
    %607 = vmatprep.subr.mxu0 0.0
    %608 = vmatpush1.msra.mxu0 0.0
    %609 = vmatprep.subr.mxu0 0.0
    %610 = vmatpush1.msra.mxu0 0.0
    %611 = vmatprep.subr.mxu0 0.0
    %612 = vmatpush1.msra.mxu0 0.0
    %613 = vmatprep.subr.mxu0 0.0
    %614 = vmatpush1.msra.mxu0 0.0
    %615 = vmatprep.subr.mxu0 0.0
    %616 = vmatpush1.msra.mxu0 0.0
    %617 = vmatprep.mubr.f32.mxu0 0.0
    %618 = vmatmul.mubr.f32.gmra.mrb[0].mxu0 %v548
    %v619 = vpop.f32.mrb[0].mxu0
    %v620 = vadd.f32 0.0, %v619
    %v621 = vpop.f32.mrb[0].mxu0
    %622 = vmatprep.mubr.f32.mxu0 0.0
    %623 = vmatmul.mubr.f32.gmra.mrb[0].mxu0 %v551
    %v624 = vpop.f32.mrb[0].mxu0
    %v625 = vadd.f32 0.0, %v624
    %v626 = vpop.f32.mrb[0].mxu0
    %627 = vdwg.mxu0
    %v629 = vsel %vm60, %v26, 0
    %v632 = vsel %vm60, %v27, 0
    %634 = vmatprep.subr.mxu0 0.0
    %635 = vmatpush1.msra.mxu0 %v56
    %636 = vmatprep.subr.mxu0 0.0
    %637 = vmatpush1.msra.mxu0 %v57
    %638 = vmatprep.subr.mxu0 0.0
    %639 = vmatpush1.msra.mxu0 %v58
    %640 = vmatprep.subr.mxu0 0.0
    %641 = vmatpush1.msra.mxu0 %v59
    %642 = vmatprep.subr.mxu0 0.0
    %643 = vmatpush1.msra.mxu0 0.0
    %644 = vmatprep.subr.mxu0 0.0
    %645 = vmatpush1.msra.mxu0 0.0
    %646 = vmatprep.subr.mxu0 0.0
    %647 = vmatpush1.msra.mxu0 0.0
    %648 = vmatprep.subr.mxu0 0.0
    %649 = vmatpush1.msra.mxu0 0.0
    %650 = vmatprep.subr.mxu0 0.0
    %651 = vmatpush1.msra.mxu0 0.0
    %652 = vmatprep.subr.mxu0 0.0
    %653 = vmatpush1.msra.mxu0 0.0
    %654 = vmatprep.subr.mxu0 0.0
    %655 = vmatpush1.msra.mxu0 0.0
    %656 = vmatprep.subr.mxu0 0.0
    %657 = vmatpush1.msra.mxu0 0.0
    %658 = vmatprep.subr.mxu0 0.0
    %659 = vmatpush1.msra.mxu0 0.0
    %660 = vmatprep.subr.mxu0 0.0
    %661 = vmatpush1.msra.mxu0 0.0
    %662 = vmatprep.subr.mxu0 0.0
    %663 = vmatpush1.msra.mxu0 0.0
    %664 = vmatprep.subr.mxu0 0.0
    %665 = vmatpush1.msra.mxu0 0.0
    %666 = vmatprep.subr.mxu0 0.0
    %667 = vmatpush1.msra.mxu0 0.0
    %668 = vmatprep.subr.mxu0 0.0
    %669 = vmatpush1.msra.mxu0 0.0
    %670 = vmatprep.subr.mxu0 0.0
    %671 = vmatpush1.msra.mxu0 0.0
    %672 = vmatprep.subr.mxu0 0.0
    %673 = vmatpush1.msra.mxu0 0.0
    %674 = vmatprep.subr.mxu0 0.0
    %675 = vmatpush1.msra.mxu0 0.0
    %676 = vmatprep.subr.mxu0 0.0
    %677 = vmatpush1.msra.mxu0 0.0
    %678 = vmatprep.subr.mxu0 0.0
    %679 = vmatpush1.msra.mxu0 0.0
    %680 = vmatprep.subr.mxu0 0.0
    %681 = vmatpush1.msra.mxu0 0.0
    %682 = vmatprep.subr.mxu0 0.0
    %683 = vmatpush1.msra.mxu0 0.0
    %684 = vmatprep.subr.mxu0 0.0
    %685 = vmatpush1.msra.mxu0 0.0
    %686 = vmatprep.subr.mxu0 0.0
    %687 = vmatpush1.msra.mxu0 0.0
    %688 = vmatprep.subr.mxu0 0.0
    %689 = vmatpush1.msra.mxu0 0.0
    %690 = vmatprep.subr.mxu0 0.0
    %691 = vmatpush1.msra.mxu0 0.0
    %692 = vmatprep.subr.mxu0 0.0
    %693 = vmatpush1.msra.mxu0 0.0
    %694 = vmatprep.subr.mxu0 0.0
    %695 = vmatpush1.msra.mxu0 0.0
    %696 = vmatprep.subr.mxu0 0.0
    %697 = vmatpush1.msra.mxu0 0.0
    %698 = vmatprep.mubr.f32.mxu0 0.0
    %699 = vmatmul.mubr.f32.gmra.mrb[0].mxu0 %v629
    %v700 = vpop.f32.mrb[0].mxu0
    %v701 = vadd.f32 0.0, %v700
    %v702 = vpop.f32.mrb[0].mxu0
    %703 = vmatprep.mubr.f32.mxu0 0.0
    %704 = vmatmul.mubr.f32.gmra.mrb[0].mxu0 %v632
    %v705 = vpop.f32.mrb[0].mxu0
    %v706 = vadd.f32 0.0, %v705
    %v707 = vpop.f32.mrb[0].mxu0
    %708 = vdwg.mxu0
    %vm709 = vcmask 130048
    %710 = vst.msk [vmem:[#allocation2] sm:$0xff] %vm709, %v134
    %711 = vst.msk [vmem:[#allocation2 + $0x8] sm:$0xff] %vm709, %v139
    %712 = vst.msk [vmem:[#allocation2 + $0x10] sm:$0xff] %vm709, %v215
    %713 = vst.msk [vmem:[#allocation2 + $0x18] sm:$0xff] %vm709, %v220
    %714 = vst.msk [vmem:[#allocation2 + $0x20] sm:$0xff] %vm709, %v296
    %715 = vst.msk [vmem:[#allocation2 + $0x28] sm:$0xff] %vm709, %v301
    %716 = vst.msk [vmem:[#allocation2 + $0x30] sm:$0xff] %vm709, %v377
    %717 = vst.msk [vmem:[#allocation2 + $0x38] sm:$0xff] %vm709, %v382
    %718 = vst.msk [vmem:[#allocation2 + $0x40] sm:$0xff] %vm709, %v458
    %719 = vst.msk [vmem:[#allocation2 + $0x48] sm:$0xff] %vm709, %v463
    %720 = vst.msk [vmem:[#allocation2 + $0x50] sm:$0xff] %vm709, %v539
    %721 = vst.msk [vmem:[#allocation2 + $0x58] sm:$0xff] %vm709, %v544
    %722 = vst.msk [vmem:[#allocation2 + $0x60] sm:$0xff] %vm709, %v620
    %723 = vst.msk [vmem:[#allocation2 + $0x68] sm:$0xff] %vm709, %v625
    %724 = vst.msk [vmem:[#allocation2 + $0x70] sm:$0xff] %vm709, %v701
    %725 = vst.msk [vmem:[#allocation2 + $0x78] sm:$0xff] %vm709, %v706
    // Predicated region
    $region10: #{tpu_custom_call.1} parent=1 // pred_check
      _
    $region11: #{tpu_custom_call.1} parent=1 // pred_check_branch
      %727 = sbr.rel (0) target = $region13
    $region12: #{tpu_custom_call.1} parent=1 // pred_region
      %s729 = ssub.s32 2048, 2048
      %730 = vsyncadd [#allocation3], %s729
      %s731 = sshll.u32 [#allocation2], 4
      %s732 = int_to_ptr.vmem [resolvable:$true] %s731
      %737 = dma.vmem_to_hbm [thread:$0]  %s732, 2048, %s2, [#allocation3], 128, 128, 8
    $region13: #{tpu_custom_call.1} parent=1 // pred_fallthru
      _
    // Predicated region
    $region14: #{tpu_custom_call.1} parent=1 // pred_check
      _
    $region15: #{tpu_custom_call.1} parent=1 // pred_check_branch
      %739 = sbr.rel (0) target = $region17
    $region16: #{tpu_custom_call.1} parent=1 // pred_region
      %740 = dma.done [#allocation3], 2048
    $region17: #{tpu_custom_call.1} parent=1 // pred_fallthru
      _
    %741 = vsyncpa [#allocation3], 1

</llo_original>
